<compile_context>
chip_gen: v6e
topology: v6e:2x2x1
jax: 0.10.0
libtpu: 0.0.40
codegen_flags: <defaults>
</compile_context>

<pallas_src>
import jax
import jax.numpy as jnp
from jax.experimental import pallas as pl
from jax.experimental.pallas import tpu as pltpu


LANE = 128  # final-layer weight is zero-padded to this many output lanes (MXU-friendly)


def _round_up(n, m):
    return ((n + m - 1) // m) * m


def mlp_kernel(x_ref, w1_ref, b1_ref, w2_ref, b2_ref, w3_ref, b3_ref,
               w4_ref, b4_ref, o_ref):
    """Fused forward: relu(relu(relu(x@W1+b1)@W2+b2)@W3+b3)@W4+b4 (no ReLU on last)."""
    x = x_ref[...]            # (tb, d_in) f32
    w1 = w1_ref[...]          # (d_in, 64) f32

    # Layer 1 on the VPU: K=d_in(=4) as broadcast multiply-adds — avoids an
    # almost-empty MXU pass per 8-row slab.
    h = b1_ref[...]                                  # (1, 64) f32, broadcasts up
    for k in range(x_ref.shape[-1]):                 # static, unrolled at trace time
        h = h + x[:, k:k + 1] * w1[k:k + 1, :]
    h = jnp.maximum(h, 0.0)                          # (tb, 64) f32

    # Layers 2-4 on the MXU: bf16 operands, f32 accumulation.
    h = jnp.maximum(
        jnp.dot(h.astype(jnp.bfloat16), w2_ref[...],
                preferred_element_type=jnp.float32) + b2_ref[...], 0.0)
    h = jnp.maximum(
        jnp.dot(h.astype(jnp.bfloat16), w3_ref[...],
                preferred_element_type=jnp.float32) + b3_ref[...], 0.0)
    y = jnp.dot(h.astype(jnp.bfloat16), w4_ref[...],
                preferred_element_type=jnp.float32) + b4_ref[...]   # (tb, 128) f32

    # Narrow store: only the real output lanes go back to HBM.
    o_ref[...] = y[:, :o_ref.shape[-1]].astype(o_ref.dtype)


def prepare_params(torch_layout_params, lane=LANE):
    """One-time parameter conversion (model-setup time, not per call).

    torch_layout_params: [(W1,b1), ..., (W4,b4)] with W in PyTorch (out, in) layout.
    Returns MXU-layout (in, out) weights — layer-1 in f32 (VPU path), layers 2-4 in
    bf16 — 2-D f32 biases, and the final layer zero-padded to `lane` output columns.
    """
    (w1, b1), (w2, b2), (w3, b3), (w4, b4) = torch_layout_params
    d_out = w4.shape[0]
    d_pad = _round_up(d_out, lane)
    w4t = jnp.zeros((w4.shape[1], d_pad), jnp.float32).at[:, :d_out].set(w4.T)
    b4p = jnp.zeros((1, d_pad), jnp.float32).at[0, :d_out].set(b4)
    prepared = (
        w1.T.astype(jnp.float32),           b1.reshape(1, -1).astype(jnp.float32),
        w2.T.astype(jnp.bfloat16),          b2.reshape(1, -1).astype(jnp.float32),
        w3.T.astype(jnp.bfloat16),          b3.reshape(1, -1).astype(jnp.float32),
        w4t.astype(jnp.bfloat16),           b4p,
    )
    return prepared, d_out


def angle_proprioception_encoder(x, prepared_params, d_out, *,
                                 block_b=2048, small_b=256):
    """x: (B, input_dim) f32. Returns (B, d_out) f32."""
    w1, b1, w2, b2, w3, b3, w4, b4 = prepared_params
    B, d_in = x.shape
    d_pad = w4.shape[1]

    if B == 0:
        return jnp.zeros((0, d_out), jnp.float32)

    # Advisory cost estimate so XLA can overlap this op with its neighbours.
    flops = 2 * B * (d_in * w1.shape[1] + w2.shape[0] * w2.shape[1]
                     + w3.shape[0] * w3.shape[1] + w4.shape[0] * d_pad)
    weight_bytes = sum(int(a.size) * a.dtype.itemsize for a in prepared_params)
    bytes_accessed = (B * d_in * x.dtype.itemsize) + (B * d_out * 4) + weight_bytes
    ce = pl.CostEstimate(flops=flops, transcendentals=0, bytes_accessed=bytes_accessed)

    args = (x, w1, b1, w2, b2, w3, b3, w4, b4)
    out_shape = jax.ShapeDtypeStruct((B, d_out), jnp.float32)

    if B <= small_b:
        # Tiny batch: whole problem is one VMEM-resident block; launch-latency bound.
        vmem = pl.BlockSpec(memory_space=pltpu.MemorySpace.VMEM)
        return pl.pallas_call(
            mlp_kernel,
            out_shape=out_shape,
            in_specs=[vmem] * len(args),
            out_specs=vmem,
            cost_estimate=ce,
        )(*args)

    # Tiled path: >=2 parallel batch blocks (feeds both TCs on v7x), weights resident
    # (constant block index), no wrapper-side padding — partial tail block is masked.
    tb = min(block_b, _round_up(pl.cdiv(B, 2), 8))
    grid = (pl.cdiv(B, tb),)
    const2 = lambda i: (0, 0)
    return pl.pallas_call(
        mlp_kernel,
        out_shape=out_shape,
        grid=grid,
        in_specs=[
            pl.BlockSpec((tb, d_in), lambda i: (i, 0)),
            pl.BlockSpec(w1.shape, const2), pl.BlockSpec(b1.shape, const2),
            pl.BlockSpec(w2.shape, const2), pl.BlockSpec(b2.shape, const2),
            pl.BlockSpec(w3.shape, const2), pl.BlockSpec(b3.shape, const2),
            pl.BlockSpec(w4.shape, const2), pl.BlockSpec(b4.shape, const2),
        ],
        out_specs=pl.BlockSpec((tb, d_out), lambda i: (i, 0)),
        compiler_params=pltpu.CompilerParams(dimension_semantics=("parallel",)),
        cost_estimate=ce,
    )(*args)


if __name__ == "__main__":
    key = jax.random.PRNGKey(0)
    ks = jax.random.split(key, 10)

    batch, input_dim, output_dim = 8, 4, 2   # module defaults
    dims = (input_dim, 64, 128, 256, output_dim)

    # Deterministic parameters in PyTorch (out, in) layout, uniform fan-in init.
    torch_params = []
    for li in range(4):
        fan_in, fan_out = dims[li], dims[li + 1]
        bound = 1.0 / (fan_in ** 0.5)
        w = jax.random.uniform(ks[2 * li], (fan_out, fan_in),
                               minval=-bound, maxval=bound, dtype=jnp.float32)
        b = jax.random.uniform(ks[2 * li + 1], (fan_out,),
                               minval=-bound, maxval=bound, dtype=jnp.float32)
        torch_params.append((w, b))

    prepared, d_out = prepare_params(torch_params)

    def ref_mlp(xx):  # pure-JAX f32 reference with original PyTorch-layout params
        h = xx
        for li, (w, b) in enumerate(torch_params):
            h = h @ w.T + b
            if li < 3:
                h = jnp.maximum(h, 0.0)
        return h

    # 1) Module-default small batch (single-block path).
    x_small = jax.random.normal(ks[8], (batch, input_dim), dtype=jnp.float32)
    out_small = jax.block_until_ready(
        angle_proprioception_encoder(x_small, prepared, d_out))
    assert out_small.shape == (batch, output_dim)
    assert jnp.allclose(out_small, ref_mlp(x_small), atol=2e-2, rtol=2e-2)

    # 2) Larger, non-tile-divisible batch (multi-block parallel grid + masked tail).
    big_b = 1100
    x_big = jax.random.normal(ks[9], (big_b, input_dim), dtype=jnp.float32)
    out_big = jax.block_until_ready(
        angle_proprioception_encoder(x_big, prepared, d_out))
    assert out_big.shape == (big_b, output_dim)
    assert jnp.allclose(out_big, ref_mlp(x_big), atol=2e-2, rtol=2e-2)

    print("KERNEL_OK")
</pallas_src>

<mosaic_0001>
module attributes {stable_mosaic.version = 11 : i64} {
  func.func @mlp_kernel(%arg0: memref<8x4xf32, #tpu.memory_space<vmem>>, %arg1: memref<4x64xf32, #tpu.memory_space<vmem>>, %arg2: memref<1x64xf32, #tpu.memory_space<vmem>>, %arg3: memref<64x128xbf16, #tpu.memory_space<vmem>>, %arg4: memref<1x128xf32, #tpu.memory_space<vmem>>, %arg5: memref<128x256xbf16, #tpu.memory_space<vmem>>, %arg6: memref<1x256xf32, #tpu.memory_space<vmem>>, %arg7: memref<256x128xbf16, #tpu.memory_space<vmem>>, %arg8: memref<1x128xf32, #tpu.memory_space<vmem>>, %arg9: memref<8x2xf32, #tpu.memory_space<vmem>>) attributes {dimension_semantics = [], scalar_prefetch = 0 : i64, scratch_operands = 0 : i64, tpu.core_type = #tpu.core_type<tc>} {
    %c0 = arith.constant 0 : index
    %c0_0 = arith.constant 0 : index
    %0 = vector.load %arg0[%c0, %c0_0] : memref<8x4xf32, #tpu.memory_space<vmem>>, vector<8x4xf32>
    %c0_1 = arith.constant 0 : index
    %c0_2 = arith.constant 0 : index
    %1 = vector.load %arg1[%c0_1, %c0_2] : memref<4x64xf32, #tpu.memory_space<vmem>>, vector<4x64xf32>
    %c0_3 = arith.constant 0 : index
    %c0_4 = arith.constant 0 : index
    %2 = vector.load %arg2[%c0_3, %c0_4] : memref<1x64xf32, #tpu.memory_space<vmem>>, vector<1x64xf32>
    %3 = vector.extract_strided_slice %0 {offsets = [0, 0], sizes = [8, 1], strides = [1, 1]} : vector<8x4xf32> to vector<8x1xf32>
    %4 = vector.extract_strided_slice %1 {offsets = [0, 0], sizes = [1, 64], strides = [1, 1]} : vector<4x64xf32> to vector<1x64xf32>
    %5 = vector.broadcast %3 : vector<8x1xf32> to vector<8x64xf32>
    %6 = vector.broadcast %4 : vector<1x64xf32> to vector<8x64xf32>
    %7 = arith.mulf %5, %6 : vector<8x64xf32>
    %8 = vector.broadcast %2 : vector<1x64xf32> to vector<8x64xf32>
    %9 = arith.addf %8, %7 : vector<8x64xf32>
    %10 = vector.extract_strided_slice %0 {offsets = [0, 1], sizes = [8, 1], strides = [1, 1]} : vector<8x4xf32> to vector<8x1xf32>
    %11 = vector.extract_strided_slice %1 {offsets = [1, 0], sizes = [1, 64], strides = [1, 1]} : vector<4x64xf32> to vector<1x64xf32>
    %12 = vector.broadcast %10 : vector<8x1xf32> to vector<8x64xf32>
    %13 = vector.broadcast %11 : vector<1x64xf32> to vector<8x64xf32>
    %14 = arith.mulf %12, %13 : vector<8x64xf32>
    %15 = arith.addf %9, %14 : vector<8x64xf32>
    %16 = vector.extract_strided_slice %0 {offsets = [0, 2], sizes = [8, 1], strides = [1, 1]} : vector<8x4xf32> to vector<8x1xf32>
    %17 = vector.extract_strided_slice %1 {offsets = [2, 0], sizes = [1, 64], strides = [1, 1]} : vector<4x64xf32> to vector<1x64xf32>
    %18 = vector.broadcast %16 : vector<8x1xf32> to vector<8x64xf32>
    %19 = vector.broadcast %17 : vector<1x64xf32> to vector<8x64xf32>
    %20 = arith.mulf %18, %19 : vector<8x64xf32>
    %21 = arith.addf %15, %20 : vector<8x64xf32>
    %22 = vector.extract_strided_slice %0 {offsets = [0, 3], sizes = [8, 1], strides = [1, 1]} : vector<8x4xf32> to vector<8x1xf32>
    %23 = vector.extract_strided_slice %1 {offsets = [3, 0], sizes = [1, 64], strides = [1, 1]} : vector<4x64xf32> to vector<1x64xf32>
    %24 = vector.broadcast %22 : vector<8x1xf32> to vector<8x64xf32>
    %25 = vector.broadcast %23 : vector<1x64xf32> to vector<8x64xf32>
    %26 = arith.mulf %24, %25 : vector<8x64xf32>
    %27 = arith.addf %21, %26 : vector<8x64xf32>
    %cst = arith.constant 0.000000e+00 : f32
    %28 = vector.broadcast %cst : f32 to vector<8x64xf32>
    %29 = arith.maximumf %27, %28 : vector<8x64xf32>
    %30 = arith.truncf %29 : vector<8x64xf32> to vector<8x64xbf16>
    %c0_5 = arith.constant 0 : index
    %c0_6 = arith.constant 0 : index
    %31 = vector.load %arg3[%c0_5, %c0_6] : memref<64x128xbf16, #tpu.memory_space<vmem>>, vector<64x128xbf16>
    %cst_7 = arith.constant dense<0.000000e+00> : vector<8x128xf32>
    %32 = tpu.matmul %30, %31, %cst_7 {dimension_numbers = #tpu.dot_dimension_numbers<[1], [0], [0], [1], [0, 0, 1, 1], [], []>} : vector<8x64xbf16>, vector<64x128xbf16>, vector<8x128xf32> -> vector<8x128xf32>
    %c0_8 = arith.constant 0 : index
    %c0_9 = arith.constant 0 : index
    %33 = vector.load %arg4[%c0_8, %c0_9] : memref<1x128xf32, #tpu.memory_space<vmem>>, vector<1x128xf32>
    %34 = vector.broadcast %33 : vector<1x128xf32> to vector<8x128xf32>
    %35 = arith.addf %32, %34 : vector<8x128xf32>
    %cst_10 = arith.constant 0.000000e+00 : f32
    %36 = vector.broadcast %cst_10 : f32 to vector<8x128xf32>
    %37 = arith.maximumf %35, %36 : vector<8x128xf32>
    %38 = arith.truncf %37 : vector<8x128xf32> to vector<8x128xbf16>
    %c0_11 = arith.constant 0 : index
    %c0_12 = arith.constant 0 : index
    %39 = vector.load %arg5[%c0_11, %c0_12] : memref<128x256xbf16, #tpu.memory_space<vmem>>, vector<128x256xbf16>
    %cst_13 = arith.constant dense<0.000000e+00> : vector<8x256xf32>
    %40 = tpu.matmul %38, %39, %cst_13 {dimension_numbers = #tpu.dot_dimension_numbers<[1], [0], [0], [1], [0, 0, 1, 1], [], []>} : vector<8x128xbf16>, vector<128x256xbf16>, vector<8x256xf32> -> vector<8x256xf32>
    %c0_14 = arith.constant 0 : index
    %c0_15 = arith.constant 0 : index
    %41 = vector.load %arg6[%c0_14, %c0_15] : memref<1x256xf32, #tpu.memory_space<vmem>>, vector<1x256xf32>
    %42 = vector.broadcast %41 : vector<1x256xf32> to vector<8x256xf32>
    %43 = arith.addf %40, %42 : vector<8x256xf32>
    %cst_16 = arith.constant 0.000000e+00 : f32
    %44 = vector.broadcast %cst_16 : f32 to vector<8x256xf32>
    %45 = arith.maximumf %43, %44 : vector<8x256xf32>
    %46 = arith.truncf %45 : vector<8x256xf32> to vector<8x256xbf16>
    %c0_17 = arith.constant 0 : index
    %c0_18 = arith.constant 0 : index
    %47 = vector.load %arg7[%c0_17, %c0_18] : memref<256x128xbf16, #tpu.memory_space<vmem>>, vector<256x128xbf16>
    %cst_19 = arith.constant dense<0.000000e+00> : vector<8x128xf32>
    %48 = tpu.matmul %46, %47, %cst_19 {dimension_numbers = #tpu.dot_dimension_numbers<[1], [0], [0], [1], [0, 0, 1, 1], [], []>} : vector<8x256xbf16>, vector<256x128xbf16>, vector<8x128xf32> -> vector<8x128xf32>
    %c0_20 = arith.constant 0 : index
    %c0_21 = arith.constant 0 : index
    %49 = vector.load %arg8[%c0_20, %c0_21] : memref<1x128xf32, #tpu.memory_space<vmem>>, vector<1x128xf32>
    %50 = vector.broadcast %49 : vector<1x128xf32> to vector<8x128xf32>
    %51 = arith.addf %48, %50 : vector<8x128xf32>
    %52 = vector.extract_strided_slice %51 {offsets = [0, 0], sizes = [8, 2], strides = [1, 1]} : vector<8x128xf32> to vector<8x2xf32>
    %c0_22 = arith.constant 0 : index
    %c0_23 = arith.constant 0 : index
    %53 = vector.load %arg9[%c0_22, %c0_23] : memref<8x2xf32, #tpu.memory_space<vmem>>, vector<8x2xf32>
    tpu.vector_store %arg9[%c0_22, %c0_23], %52 {strides = array<i32>} : memref<8x2xf32, #tpu.memory_space<vmem>>, vector<8x2xf32>,
    return
  }
}

</mosaic_0001>

<llo_original>
// kernel: tpu_custom_call.1
$region0: #{tpu_custom_call.1}
  #allocation0 [shape = 'u32[]', space=smem, size = 0x4, offset = 0x4, fixed_abs, tag = 'smem constant byte address 0x4 - core index']
  #allocation1 [shape = 'u32[144,128]{1,0:T(1,128)}', space=vmem, size = 0x12000, scoped, tag = 'internal scratch']
  %s0 = inlined_call_operand.vmem [shape: f32[8,4], index: 0, kind: input, shape index: {}]
  %s1 = inlined_call_operand.vmem [shape: f32[4,64], index: 1, kind: input, shape index: {}]
  %s2 = inlined_call_operand.vmem [shape: f32[1,64], index: 2, kind: input, shape index: {}]
  %s3 = inlined_call_operand.hbm [shape: bf16[64,128], index: 3, kind: input, shape index: {}]
  %s4 = inlined_call_operand.vmem [shape: f32[1,128], index: 4, kind: input, shape index: {}]
  %s5 = inlined_call_operand.hbm [shape: bf16[128,256], index: 5, kind: input, shape index: {}]
  %s6 = inlined_call_operand.vmem [shape: f32[1,256], index: 6, kind: input, shape index: {}]
  %s7 = inlined_call_operand.hbm [shape: bf16[256,128], index: 7, kind: input, shape index: {}]
  %s8 = inlined_call_operand.vmem [shape: f32[1,128], index: 8, kind: input, shape index: {}]
  %s9 = inlined_call_operand.vmem [shape: f32[8,2], index: 9, kind: output, shape index: {}]
  %s10 = sld [smem:[#allocation0]]
  $region58: #{tpu_custom_call.1} parent=0
    _
  %s12 = ssub.s32 1, %s10
  %s13 = scalar_select 0, %s12, %s10
  $region1: #{tpu_custom_call.1} parent=0
    #allocation2 [shape = 'u8[16384]{0}', space=vmem, size = 0x4000, scoped, tag = 'input window, operand 3, single buffered']
    #allocation3 [shape = 's32[1]{0}', space=sflag, size = 0x4, scoped, tag = 'scoped memory for tpu_custom_call.1']
    #allocation4 [shape = 'u8[65536]{0}', space=vmem, size = 0x10000, scoped, tag = 'input window, operand 5, single buffered']
    #allocation5 [shape = 's32[1]{0}', space=sflag, size = 0x4, scoped, tag = 'scoped memory for tpu_custom_call.1']
    #allocation6 [shape = 'u8[65536]{0}', space=vmem, size = 0x10000, scoped, tag = 'input window, operand 7, single buffered']
    %14 = vsyncpa [#allocation3], 0
    %15 = vsyncpa [#allocation5], 0
    // Predicated region
    $region2: #{tpu_custom_call.1} parent=1 // pred_check
      _
    $region3: #{tpu_custom_call.1} parent=1 // pred_check_branch
      %17 = sbr.rel (0) target = $region5
    $region4: #{tpu_custom_call.1} parent=1 // pred_region
      _
    $region5: #{tpu_custom_call.1} parent=1 // pred_fallthru
      _
    // Predicated region
    $region6: #{tpu_custom_call.1} parent=1 // pred_check
      _
    $region7: #{tpu_custom_call.1} parent=1 // pred_check_branch
      %19 = sbr.rel (0) target = $region9
    $region8: #{tpu_custom_call.1} parent=1 // pred_region
      _
    $region9: #{tpu_custom_call.1} parent=1 // pred_fallthru
      _
    // Predicated region
    $region10: #{tpu_custom_call.1} parent=1 // pred_check
      _
    $region11: #{tpu_custom_call.1} parent=1 // pred_check_branch
      %21 = sbr.rel (0) target = $region13
    $region12: #{tpu_custom_call.1} parent=1 // pred_region
      _
    $region13: #{tpu_custom_call.1} parent=1 // pred_fallthru
      _
    // Predicated region
    $region14: #{tpu_custom_call.1} parent=1 // pred_check
      _
    $region15: #{tpu_custom_call.1} parent=1 // pred_check_branch
      %23 = sbr.rel (0) target = $region17
    $region16: #{tpu_custom_call.1} parent=1 // pred_region
      %s25 = ssub.s32 512, 512
      %26 = vsyncadd [#allocation3], %s25
      %s27 = sshll.u32 [#allocation2], 4
      %s28 = int_to_ptr.vmem [resolvable:$true] %s27
      %33 = dma.hbm_to_vmem [thread:$0]  %s3, 512, %s28, [#allocation3], 64, 64, 4
    $region17: #{tpu_custom_call.1} parent=1 // pred_fallthru
      _
    // Predicated region
    $region18: #{tpu_custom_call.1} parent=1 // pred_check
      _
    $region19: #{tpu_custom_call.1} parent=1 // pred_check_branch
      %35 = sbr.rel (0) target = $region21
    $region20: #{tpu_custom_call.1} parent=1 // pred_region
      _
    $region21: #{tpu_custom_call.1} parent=1 // pred_fallthru
      _
    // Predicated region
    $region22: #{tpu_custom_call.1} parent=1 // pred_check
      _
    $region23: #{tpu_custom_call.1} parent=1 // pred_check_branch
      %37 = sbr.rel (0) target = $region25
    $region24: #{tpu_custom_call.1} parent=1 // pred_region
      %s39 = ssub.s32 2048, 2048
      %40 = vsyncadd [#allocation5], %s39
      %s41 = sshll.u32 [#allocation4], 4
      %s42 = int_to_ptr.vmem [resolvable:$true] %s41
      %47 = dma.hbm_to_vmem [thread:$0]  %s5, 2048, %s42, [#allocation5], 128, 128, 8
    $region25: #{tpu_custom_call.1} parent=1 // pred_fallthru
      _
    // Predicated region
    $region26: #{tpu_custom_call.1} parent=1 // pred_check
      _
    $region27: #{tpu_custom_call.1} parent=1 // pred_check_branch
      %49 = sbr.rel (0) target = $region29
    $region28: #{tpu_custom_call.1} parent=1 // pred_region
      _
    $region29: #{tpu_custom_call.1} parent=1 // pred_fallthru
      _
    // Predicated region
    $region30: #{tpu_custom_call.1} parent=1 // pred_check
      _
    $region31: #{tpu_custom_call.1} parent=1 // pred_check_branch
      %51 = sbr.rel (0) target = $region33
    $region32: #{tpu_custom_call.1} parent=1 // pred_region
      %s53 = ssub.s32 2048, 2048
      %54 = vsyncadd [#allocation5], %s53
      %s55 = sshll.u32 [#allocation6], 4
      %s56 = int_to_ptr.vmem [resolvable:$true] %s55
      %61 = dma.hbm_to_vmem [thread:$0]  %s7, 2048, %s56, [#allocation5], 64, 64, 4
    $region33: #{tpu_custom_call.1} parent=1 // pred_fallthru
      _
    // Predicated region
    $region34: #{tpu_custom_call.1} parent=1 // pred_check
      _
    $region35: #{tpu_custom_call.1} parent=1 // pred_check_branch
      %63 = sbr.rel (0) target = $region37
    $region36: #{tpu_custom_call.1} parent=1 // pred_region
      _
    $region37: #{tpu_custom_call.1} parent=1 // pred_fallthru
      _
    // Predicated region
    $region38: #{tpu_custom_call.1} parent=1 // pred_check
      _
    $region39: #{tpu_custom_call.1} parent=1 // pred_check_branch
      %65 = sbr.rel (0) target = $region41
    $region40: #{tpu_custom_call.1} parent=1 // pred_region
      %66 = dma.done [#allocation3], 512
    $region41: #{tpu_custom_call.1} parent=1 // pred_fallthru
      _
    // Predicated region
    $region42: #{tpu_custom_call.1} parent=1 // pred_check
      _
    $region43: #{tpu_custom_call.1} parent=1 // pred_check_branch
      %68 = sbr.rel (0) target = $region45
    $region44: #{tpu_custom_call.1} parent=1 // pred_region
      %69 = dma.done [#allocation5], 2048
    $region45: #{tpu_custom_call.1} parent=1 // pred_fallthru
      _
    // Predicated region
    $region46: #{tpu_custom_call.1} parent=1 // pred_check
      _
    $region47: #{tpu_custom_call.1} parent=1 // pred_check_branch
      %71 = sbr.rel (0) target = $region49
    $region48: #{tpu_custom_call.1} parent=1 // pred_region
      %72 = dma.done [#allocation5], 2048
    $region49: #{tpu_custom_call.1} parent=1 // pred_fallthru
      _
    %v74 = vld [vmem:[%s0] sm:$0xff]
    %v75 = vld [vmem:[%s1] sm:$0xf]
    %v76 = vld [vmem:[%s2] sm:$0x1]
    %78 = vset.pattern.permute.xlu0 0
    %79 = vperm.xlu0 %78, %v74
    %v80 = vpop.permute.xlu0 %79
    %v82 = vlaneseq
    %v83 = vshrl.u32 %v82, 7
    %v84 = vsub.s32 0, %v83
    %v85 = vrot.slane %v75, %v84
    %v86 = vmul.f32 %v80, %v85
    %v88 = vlaneseq
    %v89 = vshrl.u32 %v88, 7
    %v90 = vsub.s32 0, %v89
    %v91 = vrot.slane %v76, %v90
    %v93 = vadd.f32 %v91, %v86
    %94 = vset.pattern.permute.xlu0 1
    %95 = vperm.xlu0 %94, %v74
    %v96 = vpop.permute.xlu0 %95
    %v98 = vlaneseq
    %v99 = vshrl.u32 %v98, 7
    %v100 = vsub.s32 1, %v99
    %v101 = vrot.slane %v75, %v100
    %v102 = vmul.f32 %v96, %v101
    %v103 = vadd.f32 %v93, %v102
    %104 = vset.pattern.permute.xlu0 2
    %105 = vperm.xlu0 %104, %v74
    %v106 = vpop.permute.xlu0 %105
    %v108 = vlaneseq
    %v109 = vshrl.u32 %v108, 7
    %v110 = vsub.s32 2, %v109
    %v111 = vrot.slane %v75, %v110
    %v112 = vmul.f32 %v106, %v111
    %v113 = vadd.f32 %v103, %v112
    %114 = vset.pattern.permute.xlu0 3
    %115 = vperm.xlu0 %114, %v74
    %v116 = vpop.permute.xlu0 %115
    %v118 = vlaneseq
    %v119 = vshrl.u32 %v118, 7
    %v120 = vsub.s32 3, %v119
    %v121 = vrot.slane %v75, %v120
    %v122 = vmul.f32 %v116, %v121
    %v123 = vadd.f32 %v113, %v122
    %v124 = vmax.f32 %v123, 0.0
    %v125 = vpack.c.bf16 %v124, %v124
    %v126 = vld [vmem:[#allocation2] sm:$0xf]
    %v127 = vld [vmem:[#allocation2 + $0x4] sm:$0xf]
    %v128 = vld [vmem:[#allocation2 + $0x8] sm:$0xf]
    %v129 = vld [vmem:[#allocation2 + $0xc] sm:$0xf]
    %v130 = vld [vmem:[#allocation2 + $0x10] sm:$0xf]
    %v131 = vld [vmem:[#allocation2 + $0x14] sm:$0xf]
    %v132 = vld [vmem:[#allocation2 + $0x18] sm:$0xf]
    %v133 = vld [vmem:[#allocation2 + $0x1c] sm:$0xf]
    %v134 = vld [vmem:[%s4] sm:$0x1]
    %v136 = vlaneseq
    %v137 = vshrl.u32 %v136, 7
    %v138 = vsub.s32 0, %v137
    %v139 = vrot.slane %v134, %v138
    %v149 = vunpack.c.l.b16 %v126
    %v150 = vunpack.c.l.b16 %v127
    %v151 = vunpack.c.l.b16 %v128
    %v152 = vunpack.c.l.b16 %v129
    %v153 = vunpack.c.l.b16 %v130
    %v154 = vunpack.c.l.b16 %v131
    %v155 = vunpack.c.l.b16 %v132
    %v156 = vunpack.c.l.b16 %v133
    %v157 = vpack.c.b16 %v150, %v149
    %v158 = vpack.c.b16 %v152, %v151
    %v159 = vpack.c.b16 %v154, %v153
    %v160 = vpack.c.b16 %v156, %v155
    %vm165 = vcmask 523264
    %v167 = vsel %vm165, %v125, 0
    %169 = vmatprep.subr.bf16.mxu0 0
    %170 = vmatpush1.bf16.msra.mxu0 0
    %171 = vmatprep.subr.bf16.mxu0 0
    %172 = vmatpush1.bf16.msra.mxu0 0
    %173 = vmatprep.subr.bf16.mxu0 0
    %174 = vmatpush1.bf16.msra.mxu0 0
    %175 = vmatprep.subr.bf16.mxu0 0
    %176 = vmatpush1.bf16.msra.mxu0 0
    %177 = vmatprep.subr.bf16.mxu0 0
    %178 = vmatpush1.bf16.msra.mxu0 %v160
    %179 = vmatprep.subr.bf16.mxu0 0
    %180 = vmatpush1.bf16.msra.mxu0 %v159
    %181 = vmatprep.subr.bf16.mxu0 0
    %182 = vmatpush1.bf16.msra.mxu0 %v158
    %183 = vmatprep.subr.bf16.mxu0 0
    %184 = vmatpush1.bf16.msra.mxu0 %v157
    %185 = vmatprep.subr.bf16.mxu0 0
    %186 = vmatpush2.bf16.msra.mxu0 0
    %187 = vmatprep.subr.bf16.mxu0 0
    %188 = vmatpush2.bf16.msra.mxu0 0
    %189 = vmatprep.subr.bf16.mxu0 0
    %190 = vmatpush2.bf16.msra.mxu0 0
    %191 = vmatprep.subr.bf16.mxu0 0
    %192 = vmatpush2.bf16.msra.mxu0 0
    %193 = vmatprep.subr.bf16.mxu0 0
    %194 = vmatpush2.bf16.msra.mxu0 0
    %195 = vmatprep.subr.bf16.mxu0 0
    %196 = vmatpush2.bf16.msra.mxu0 0
    %197 = vmatprep.subr.bf16.mxu0 0
    %198 = vmatpush2.bf16.msra.mxu0 0
    %199 = vmatprep.subr.bf16.mxu0 0
    %200 = vmatpush2.bf16.msra.mxu0 0
    %201 = vmatprep.mubr.bf16.mxu0 0
    %202 = vmatmul.mubr.bf16.gmra.mxu0 %v167
    %v203 = vpop.f32.mrf.mxu0
    %v204 = vadd.f32 %v139, %v203
    %v205 = vpop.f32.mrf.mxu0
    %v206 = vpop.f32.mrf.mxu0
    %v207 = vpop.f32.mrf.mxu0
    %208 = vdwg.mxu0
    %v209 = vmax.f32 %v204, 0.0
    %v210 = vpack.c.bf16 %v209, %v209
    %v211 = vld [vmem:[#allocation4] sm:$0xff]
    %v212 = vld [vmem:[#allocation4 + $0x8] sm:$0xff]
    %v213 = vld [vmem:[#allocation4 + $0x10] sm:$0xff]
    %v214 = vld [vmem:[#allocation4 + $0x18] sm:$0xff]
    %v215 = vld [vmem:[#allocation4 + $0x20] sm:$0xff]
    %v216 = vld [vmem:[#allocation4 + $0x28] sm:$0xff]
    %v217 = vld [vmem:[#allocation4 + $0x30] sm:$0xff]
    %v218 = vld [vmem:[#allocation4 + $0x38] sm:$0xff]
    %v219 = vld [vmem:[#allocation4 + $0x40] sm:$0xff]
    %v220 = vld [vmem:[#allocation4 + $0x48] sm:$0xff]
    %v221 = vld [vmem:[#allocation4 + $0x50] sm:$0xff]
    %v222 = vld [vmem:[#allocation4 + $0x58] sm:$0xff]
    %v223 = vld [vmem:[#allocation4 + $0x60] sm:$0xff]
    %v224 = vld [vmem:[#allocation4 + $0x68] sm:$0xff]
    %v225 = vld [vmem:[#allocation4 + $0x70] sm:$0xff]
    %v226 = vld [vmem:[#allocation4 + $0x78] sm:$0xff]
    %v227 = vld [vmem:[%s6] sm:$0x3]
    %v229 = vlaneseq
    %v230 = vshrl.u32 %v229, 7
    %v231 = vsub.s32 0, %v230
    %v232 = vrot.slane %v227, %v231
    %v233 = vlaneseq
    %v234 = vshrl.u32 %v233, 7
    %v235 = vsub.s32 1, %v234
    %v236 = vrot.slane %v227, %v235
    %v255 = vunpack.c.l.b16 %v211
    %v256 = vunpack.c.h.b16 %v211
    %v257 = vunpack.c.l.b16 %v212
    %v258 = vunpack.c.h.b16 %v212
    %v259 = vunpack.c.l.b16 %v213
    %v260 = vunpack.c.h.b16 %v213
    %v261 = vunpack.c.l.b16 %v214
    %v262 = vunpack.c.h.b16 %v214
    %v263 = vunpack.c.l.b16 %v215
    %v264 = vunpack.c.h.b16 %v215
    %v265 = vunpack.c.l.b16 %v216
    %v266 = vunpack.c.h.b16 %v216
    %v267 = vunpack.c.l.b16 %v217
    %v268 = vunpack.c.h.b16 %v217
    %v269 = vunpack.c.l.b16 %v218
    %v270 = vunpack.c.h.b16 %v218
    %v271 = vunpack.c.l.b16 %v219
    %v272 = vunpack.c.h.b16 %v219
    %v273 = vunpack.c.l.b16 %v220
    %v274 = vunpack.c.h.b16 %v220
    %v275 = vunpack.c.l.b16 %v221
    %v276 = vunpack.c.h.b16 %v221
    %v277 = vunpack.c.l.b16 %v222
    %v278 = vunpack.c.h.b16 %v222
    %v279 = vunpack.c.l.b16 %v223
    %v280 = vunpack.c.h.b16 %v223
    %v281 = vunpack.c.l.b16 %v224
    %v282 = vunpack.c.h.b16 %v224
    %v283 = vunpack.c.l.b16 %v225
    %v284 = vunpack.c.h.b16 %v225
    %v285 = vunpack.c.l.b16 %v226
    %v286 = vunpack.c.h.b16 %v226
    %v287 = vpack.c.b16 %v257, %v255
    %v288 = vpack.c.b16 %v258, %v256
    %v289 = vpack.c.b16 %v261, %v259
    %v290 = vpack.c.b16 %v262, %v260
    %v291 = vpack.c.b16 %v265, %v263
    %v292 = vpack.c.b16 %v266, %v264
    %v293 = vpack.c.b16 %v269, %v267
    %v294 = vpack.c.b16 %v270, %v268
    %v295 = vpack.c.b16 %v273, %v271
    %v296 = vpack.c.b16 %v274, %v272
    %v297 = vpack.c.b16 %v277, %v275
    %v298 = vpack.c.b16 %v278, %v276
    %v299 = vpack.c.b16 %v281, %v279
    %v300 = vpack.c.b16 %v282, %v280
    %v301 = vpack.c.b16 %v285, %v283
    %v302 = vpack.c.b16 %v286, %v284
    %319 = vmatprep.subr.bf16.mxu0 %v302
    %320 = vmatpush1.bf16.msra.mxu0 %v301
    %321 = vmatprep.subr.bf16.mxu0 %v300
    %322 = vmatpush1.bf16.msra.mxu0 %v299
    %323 = vmatprep.subr.bf16.mxu0 %v298
    %324 = vmatpush1.bf16.msra.mxu0 %v297
    %325 = vmatprep.subr.bf16.mxu0 %v296
    %326 = vmatpush1.bf16.msra.mxu0 %v295
    %327 = vmatprep.subr.bf16.mxu0 %v294
    %328 = vmatpush1.bf16.msra.mxu0 %v293
    %329 = vmatprep.subr.bf16.mxu0 %v292
    %330 = vmatpush1.bf16.msra.mxu0 %v291
    %331 = vmatprep.subr.bf16.mxu0 %v290
    %332 = vmatpush1.bf16.msra.mxu0 %v289
    %333 = vmatprep.subr.bf16.mxu0 %v288
    %334 = vmatpush1.bf16.msra.mxu0 %v287
    %335 = vmatprep.subr.bf16.mxu0 0
    %336 = vmatpush2.bf16.msra.mxu0 0
    %337 = vmatprep.subr.bf16.mxu0 0
    %338 = vmatpush2.bf16.msra.mxu0 0
    %339 = vmatprep.subr.bf16.mxu0 0
    %340 = vmatpush2.bf16.msra.mxu0 0
    %341 = vmatprep.subr.bf16.mxu0 0
    %342 = vmatpush2.bf16.msra.mxu0 0
    %343 = vmatprep.subr.bf16.mxu0 0
    %344 = vmatpush2.bf16.msra.mxu0 0
    %345 = vmatprep.subr.bf16.mxu0 0
    %346 = vmatpush2.bf16.msra.mxu0 0
    %347 = vmatprep.subr.bf16.mxu0 0
    %348 = vmatpush2.bf16.msra.mxu0 0
    %349 = vmatprep.subr.bf16.mxu0 0
    %350 = vmatpush2.bf16.msra.mxu0 0
    %351 = vmatprep.mubr.bf16.mxu0 0
    %352 = vmatmul.mubr.bf16.gmra.mxu0 %v210
    %v353 = vpop.f32.mrf.mxu0
    %v354 = vadd.f32 %v232, %v353
    %v355 = vpop.f32.mrf.mxu0
    %v356 = vadd.f32 %v236, %v355
    %v357 = vpop.f32.mrf.mxu0
    %v358 = vpop.f32.mrf.mxu0
    %359 = vdwg.mxu0
    %v360 = vmax.f32 %v354, 0.0
    %v361 = vmax.f32 %v356, 0.0
    %v362 = vpack.c.bf16 %v360, %v360
    %v363 = vpack.c.bf16 %v361, %v361
    %v364 = vld [vmem:[#allocation6] sm:$0xf]
    %v365 = vld [vmem:[#allocation6 + $0x4] sm:$0xf]
    %v366 = vld [vmem:[#allocation6 + $0x8] sm:$0xf]
    %v367 = vld [vmem:[#allocation6 + $0xc] sm:$0xf]
    %v368 = vld [vmem:[#allocation6 + $0x10] sm:$0xf]
    %v369 = vld [vmem:[#allocation6 + $0x14] sm:$0xf]
    %v370 = vld [vmem:[#allocation6 + $0x18] sm:$0xf]
    %v371 = vld [vmem:[#allocation6 + $0x1c] sm:$0xf]
    %v372 = vld [vmem:[#allocation6 + $0x20] sm:$0xf]
    %v373 = vld [vmem:[#allocation6 + $0x24] sm:$0xf]
    %v374 = vld [vmem:[#allocation6 + $0x28] sm:$0xf]
    %v375 = vld [vmem:[#allocation6 + $0x2c] sm:$0xf]
    %v376 = vld [vmem:[#allocation6 + $0x30] sm:$0xf]
    %v377 = vld [vmem:[#allocation6 + $0x34] sm:$0xf]
    %v378 = vld [vmem:[#allocation6 + $0x38] sm:$0xf]
    %v379 = vld [vmem:[#allocation6 + $0x3c] sm:$0xf]
    %v380 = vld [vmem:[#allocation6 + $0x40] sm:$0xf]
    %v381 = vld [vmem:[#allocation6 + $0x44] sm:$0xf]
    %v382 = vld [vmem:[#allocation6 + $0x48] sm:$0xf]
    %v383 = vld [vmem:[#allocation6 + $0x4c] sm:$0xf]
    %v384 = vld [vmem:[#allocation6 + $0x50] sm:$0xf]
    %v385 = vld [vmem:[#allocation6 + $0x54] sm:$0xf]
    %v386 = vld [vmem:[#allocation6 + $0x58] sm:$0xf]
    %v387 = vld [vmem:[#allocation6 + $0x5c] sm:$0xf]
    %v388 = vld [vmem:[#allocation6 + $0x60] sm:$0xf]
    %v389 = vld [vmem:[#allocation6 + $0x64] sm:$0xf]
    %v390 = vld [vmem:[#allocation6 + $0x68] sm:$0xf]
    %v391 = vld [vmem:[#allocation6 + $0x6c] sm:$0xf]
    %v392 = vld [vmem:[#allocation6 + $0x70] sm:$0xf]
    %v393 = vld [vmem:[#allocation6 + $0x74] sm:$0xf]
    %v394 = vld [vmem:[#allocation6 + $0x78] sm:$0xf]
    %v395 = vld [vmem:[#allocation6 + $0x7c] sm:$0xf]
    %v396 = vld [vmem:[%s8] sm:$0x1]
    %v398 = vlaneseq
    %v399 = vshrl.u32 %v398, 7
    %v400 = vsub.s32 0, %v399
    %v401 = vrot.slane %v396, %v400
    %v435 = vunpack.c.l.b16 %v364
    %v436 = vunpack.c.l.b16 %v365
    %v437 = vunpack.c.l.b16 %v366
    %v438 = vunpack.c.l.b16 %v367
    %v439 = vunpack.c.l.b16 %v368
    %v440 = vunpack.c.l.b16 %v369
    %v441 = vunpack.c.l.b16 %v370
    %v442 = vunpack.c.l.b16 %v371
    %v443 = vunpack.c.l.b16 %v372
    %v444 = vunpack.c.l.b16 %v373
    %v445 = vunpack.c.l.b16 %v374
    %v446 = vunpack.c.l.b16 %v375
    %v447 = vunpack.c.l.b16 %v376
    %v448 = vunpack.c.l.b16 %v377
    %v449 = vunpack.c.l.b16 %v378
    %v450 = vunpack.c.l.b16 %v379
    %v451 = vunpack.c.l.b16 %v380
    %v452 = vunpack.c.l.b16 %v381
    %v453 = vunpack.c.l.b16 %v382
    %v454 = vunpack.c.l.b16 %v383
    %v455 = vunpack.c.l.b16 %v384
    %v456 = vunpack.c.l.b16 %v385
    %v457 = vunpack.c.l.b16 %v386
    %v458 = vunpack.c.l.b16 %v387
    %v459 = vunpack.c.l.b16 %v388
    %v460 = vunpack.c.l.b16 %v389
    %v461 = vunpack.c.l.b16 %v390
    %v462 = vunpack.c.l.b16 %v391
    %v463 = vunpack.c.l.b16 %v392
    %v464 = vunpack.c.l.b16 %v393
    %v465 = vunpack.c.l.b16 %v394
    %v466 = vunpack.c.l.b16 %v395
    %v467 = vpack.c.b16 %v436, %v435
    %v468 = vpack.c.b16 %v438, %v437
    %v469 = vpack.c.b16 %v440, %v439
    %v470 = vpack.c.b16 %v442, %v441
    %v471 = vpack.c.b16 %v444, %v443
    %v472 = vpack.c.b16 %v446, %v445
    %v473 = vpack.c.b16 %v448, %v447
    %v474 = vpack.c.b16 %v450, %v449
    %v475 = vpack.c.b16 %v452, %v451
    %v476 = vpack.c.b16 %v454, %v453
    %v477 = vpack.c.b16 %v456, %v455
    %v478 = vpack.c.b16 %v458, %v457
    %v479 = vpack.c.b16 %v460, %v459
    %v480 = vpack.c.b16 %v462, %v461
    %v481 = vpack.c.b16 %v464, %v463
    %v482 = vpack.c.b16 %v466, %v465
    %499 = vmatprep.subr.bf16.mxu0 0
    %500 = vmatpush1.bf16.msra.mxu0 %v474
    %501 = vmatprep.subr.bf16.mxu0 0
    %502 = vmatpush1.bf16.msra.mxu0 %v473
    %503 = vmatprep.subr.bf16.mxu0 0
    %504 = vmatpush1.bf16.msra.mxu0 %v472
    %505 = vmatprep.subr.bf16.mxu0 0
    %506 = vmatpush1.bf16.msra.mxu0 %v471
    %507 = vmatprep.subr.bf16.mxu0 0
    %508 = vmatpush1.bf16.msra.mxu0 %v470
    %509 = vmatprep.subr.bf16.mxu0 0
    %510 = vmatpush1.bf16.msra.mxu0 %v469
    %511 = vmatprep.subr.bf16.mxu0 0
    %512 = vmatpush1.bf16.msra.mxu0 %v468
    %513 = vmatprep.subr.bf16.mxu0 0
    %514 = vmatpush1.bf16.msra.mxu0 %v467
    %515 = vmatprep.subr.bf16.mxu0 0
    %516 = vmatpush2.bf16.msra.mxu0 %v482
    %517 = vmatprep.subr.bf16.mxu0 0
    %518 = vmatpush2.bf16.msra.mxu0 %v481
    %519 = vmatprep.subr.bf16.mxu0 0
    %520 = vmatpush2.bf16.msra.mxu0 %v480
    %521 = vmatprep.subr.bf16.mxu0 0
    %522 = vmatpush2.bf16.msra.mxu0 %v479
    %523 = vmatprep.subr.bf16.mxu0 0
    %524 = vmatpush2.bf16.msra.mxu0 %v478
    %525 = vmatprep.subr.bf16.mxu0 0
    %526 = vmatpush2.bf16.msra.mxu0 %v477
    %527 = vmatprep.subr.bf16.mxu0 0
    %528 = vmatpush2.bf16.msra.mxu0 %v476
    %529 = vmatprep.subr.bf16.mxu0 0
    %530 = vmatpush2.bf16.msra.mxu0 %v475
    %531 = vmatprep.mubr.bf16.mxu0 %v363
    %532 = vmatmul.mubr.bf16.gmra.mxu0 %v362
    %v533 = vpop.f32.mrf.mxu0
    %v534 = vadd.f32 %v401, %v533
    %v535 = vpop.f32.mrf.mxu0
    %v536 = vpop.f32.mrf.mxu0
    %v537 = vpop.f32.mrf.mxu0
    %538 = vdwg.mxu0
    %vm539 = vcmask 15360
    %540 = vst.msk [vmem:[%s9] sm:$0xff] %vm539, %v534
    // Predicated region
    $region50: #{tpu_custom_call.1} parent=1 // pred_check
      _
    $region51: #{tpu_custom_call.1} parent=1 // pred_check_branch
      %542 = sbr.rel (0) target = $region53
    $region52: #{tpu_custom_call.1} parent=1 // pred_region
      _
    $region53: #{tpu_custom_call.1} parent=1 // pred_fallthru
      _
    // Predicated region
    $region54: #{tpu_custom_call.1} parent=1 // pred_check
      _
    $region55: #{tpu_custom_call.1} parent=1 // pred_check_branch
      %544 = sbr.rel (0) target = $region57
    $region56: #{tpu_custom_call.1} parent=1 // pred_region
      _
    $region57: #{tpu_custom_call.1} parent=1 // pred_fallthru
      _
    %545 = vsyncpa [#allocation3], 1
    %546 = vsyncpa [#allocation5], 1

</llo_original>
